<compile_context>
chip_gen: v5e
topology: v5e:2x2
jax: 0.10.0
libtpu: 0.0.40
codegen_flags: <defaults>
</compile_context>

<pallas_src>
import functools

import jax
import jax.numpy as jnp
from jax.experimental import pallas as pl
from jax.experimental.pallas import tpu as pltpu


def _round_up(x: int, m: int) -> int:
    return ((x + m - 1) // m) * m


def _classification_head_kernel(x_ref, w1_ref, b1_ref, w2_ref, b2_ref, o_ref):
    """One grid step == one tile of TM flattened (batch*seq) rows.

    x_ref  : (TM, H)   input rows (native dtype; cast to bf16 for the MXU)
    w1_ref : (H, H)    dense weight   (bf16, stored [in, out])
    b1_ref : (1, H)    dense bias     (f32)
    w2_ref : (H, Lp)   out_proj weight (bf16, [in, out], labels padded to Lp)
    b2_ref : (1, Lp)   out_proj bias   (f32, padded)
    o_ref  : (TM, Lp)  logits tile
    """
    # dense: bf16 operands, f32 accumulation (dropout == identity in eval mode)
    xb = x_ref[...].astype(jnp.bfloat16)
    h = jnp.dot(xb, w1_ref[...], preferred_element_type=jnp.float32)
    # bias + tanh in f32 (VPU/EUP)
    h = jnp.tanh(h + b1_ref[...])
    # out_proj: cast activation to bf16 for the second MXU GEMM, f32 accumulate
    out = (
        jnp.dot(h.astype(jnp.bfloat16), w2_ref[...],
                preferred_element_type=jnp.float32)
        + b2_ref[...]
    )
    o_ref[...] = out.astype(o_ref.dtype)


@functools.partial(jax.jit, static_argnames=("row_tile",))
def classification_head(x, dense_w, dense_b, out_w, out_b, *, row_tile=512):
    """x: [B, S, H] -> logits [B, S, num_labels].

    Weights are stored [in, out] (i.e. already transposed vs torch's nn.Linear
    [out, in]); semantics are identical: y = x @ W + b.
    """
    B, S, H = x.shape
    L = out_w.shape[1]
    M = B * S

    # Row tiling: big tiles amortize per-grid-step overhead and fill MXU rows;
    # multiple of 16 for bf16 sublane packing.  Small inputs shrink to fit.
    TM = min(row_tile, _round_up(M, 16))
    Lp = _round_up(L, 128)  # lane-dense output stores

    x2 = x.reshape(M, H)                      # metadata-only reshape, no HBM pass
    w1 = dense_w.astype(jnp.bfloat16)         # one-off tiny cast: halves resident VMEM
    b1 = dense_b.astype(jnp.float32).reshape(1, H)
    w2 = out_w.astype(jnp.bfloat16)
    b2 = out_b.astype(jnp.float32)
    if Lp != L:
        w2 = jnp.pad(w2, ((0, 0), (0, Lp - L)))
        b2 = jnp.pad(b2, ((0, Lp - L),))
    b2 = b2.reshape(1, Lp)

    out_dtype = x.dtype
    x_bytes = x.dtype.itemsize

    # VMEM budget from actual block sizes (streamed blocks double-buffered;
    # constant-index weights counted twice to be safe) + compiler headroom.
    vmem_bytes = (
        2 * TM * H * x_bytes              # streamed x tiles
        + 2 * TM * Lp * x_bytes           # streamed output tiles
        + 2 * (H * H + H * Lp) * 2        # bf16 resident weights
        + 2 * (H + Lp) * 4                # f32 biases
        + TM * max(H, Lp) * 4             # f32 intermediates
        + 4 * 1024 * 1024                 # scratch / regalloc headroom
    )
    vmem_limit = int(min(max(vmem_bytes, 16 * 1024 * 1024), 64 * 1024 * 1024))

    grid = (pl.cdiv(M, TM),)              # ragged last block handled by Pallas

    out_padded = pl.pallas_call(
        _classification_head_kernel,
        out_shape=jax.ShapeDtypeStruct((M, Lp), out_dtype),
        grid_spec=pltpu.PrefetchScalarGridSpec(
            num_scalar_prefetch=0,
            grid=grid,
            in_specs=[
                pl.BlockSpec((TM, H), lambda i: (i, 0)),   # x rows (streamed)
                pl.BlockSpec((H, H), lambda i: (0, 0)),    # dense weight (resident)
                pl.BlockSpec((1, H), lambda i: (0, 0)),    # dense bias   (resident)
                pl.BlockSpec((H, Lp), lambda i: (0, 0)),   # out_proj weight (resident)
                pl.BlockSpec((1, Lp), lambda i: (0, 0)),   # out_proj bias   (resident)
            ],
            out_specs=pl.BlockSpec((TM, Lp), lambda i: (i, 0)),
        ),
        compiler_params=pltpu.CompilerParams(
            dimension_semantics=("parallel",),   # lets v7x split tiles across its 2 TCs
            vmem_limit_bytes=vmem_limit,
        ),
    )(x2, w1, b1, w2, b2)

    return out_padded[:, :L].reshape(B, S, L)


def _reference(x, dense_w, dense_b, out_w, out_b):
    h = jnp.tanh(jnp.einsum("bsh,hk->bsk", x, dense_w) + dense_b)
    return jnp.einsum("bsh,hl->bsl", h, out_w) + out_b


if __name__ == "__main__":
    # Small shapes consistent with the module: batch=2, seq=8, hidden=128,
    # num_labels=4.  (hidden=128 keeps the (8,128) lane constraint natural.)
    B, S, H, L = 2, 8, 128, 4

    key = jax.random.PRNGKey(0)
    kx, kw1, kb1, kw2, kb2 = jax.random.split(key, 5)

    x = jax.random.normal(kx, (B, S, H), jnp.float32)
    dense_w = jax.random.normal(kw1, (H, H), jnp.float32) * 0.02
    dense_b = jax.random.normal(kb1, (H,), jnp.float32) * 0.02
    out_w = jax.random.normal(kw2, (H, L), jnp.float32) * 0.02
    out_b = jax.random.normal(kb2, (L,), jnp.float32) * 0.02

    logits = classification_head(x, dense_w, dense_b, out_w, out_b)
    jax.block_until_ready(logits)

    ref = _reference(x, dense_w, dense_b, out_w, out_b)
    assert logits.shape == (B, S, L), logits.shape
    # Tolerance loosened vs the f32 reference because MXU operands are bf16
    # (accumulation, bias and tanh remain f32).
    assert jnp.allclose(logits, ref, atol=2e-2, rtol=2e-2), (
        float(jnp.max(jnp.abs(logits - ref))))

    print("KERNEL_OK")
</pallas_src>

<mosaic_0001>
module attributes {stable_mosaic.version = 11 : i64} {
  func.func @_classification_head_kernel(%arg0: i32, %arg1: memref<16x128xf32, #tpu.memory_space<vmem>>, %arg2: memref<128x128xbf16, #tpu.memory_space<vmem>>, %arg3: memref<1x128xf32, #tpu.memory_space<vmem>>, %arg4: memref<128x128xbf16, #tpu.memory_space<vmem>>, %arg5: memref<1x128xf32, #tpu.memory_space<vmem>>, %arg6: memref<16x128xf32, #tpu.memory_space<vmem>>) attributes {dimension_semantics = [#tpu.dimension_semantics<parallel>], iteration_bounds = array<i64: 1>, scalar_prefetch = 0 : i64, scratch_operands = 0 : i64, tpu.core_type = #tpu.core_type<tc>, window_params = [{transform_indices = @transform_0, window_bounds = array<i64: 16, 128>}, {pipeline_mode = #tpu.pipeline_mode<synchronous>, transform_indices = @transform_1, window_bounds = array<i64: 128, 128>}, {pipeline_mode = #tpu.pipeline_mode<synchronous>, transform_indices = @transform_2, window_bounds = array<i64: 1, 128>}, {pipeline_mode = #tpu.pipeline_mode<synchronous>, transform_indices = @transform_3, window_bounds = array<i64: 128, 128>}, {pipeline_mode = #tpu.pipeline_mode<synchronous>, transform_indices = @transform_4, window_bounds = array<i64: 1, 128>}, {transform_indices = @transform_5, window_bounds = array<i64: 16, 128>}]} {
    %c0 = arith.constant 0 : index
    %c0_0 = arith.constant 0 : index
    %0 = vector.load %arg1[%c0, %c0_0] : memref<16x128xf32, #tpu.memory_space<vmem>>, vector<16x128xf32>
    %1 = arith.truncf %0 : vector<16x128xf32> to vector<16x128xbf16>
    %c0_1 = arith.constant 0 : index
    %c0_2 = arith.constant 0 : index
    %2 = vector.load %arg2[%c0_1, %c0_2] : memref<128x128xbf16, #tpu.memory_space<vmem>>, vector<128x128xbf16>
    %cst = arith.constant dense<0.000000e+00> : vector<16x128xf32>
    %3 = tpu.matmul %1, %2, %cst {dimension_numbers = #tpu.dot_dimension_numbers<[1], [0], [0], [1], [0, 0, 1, 1], [], []>} : vector<16x128xbf16>, vector<128x128xbf16>, vector<16x128xf32> -> vector<16x128xf32>
    %c0_3 = arith.constant 0 : index
    %c0_4 = arith.constant 0 : index
    %4 = vector.load %arg3[%c0_3, %c0_4] : memref<1x128xf32, #tpu.memory_space<vmem>>, vector<1x128xf32>
    %5 = vector.broadcast %4 : vector<1x128xf32> to vector<16x128xf32>
    %6 = arith.addf %3, %5 : vector<16x128xf32>
    %7 = math.tanh %6 : vector<16x128xf32>
    %8 = arith.truncf %7 : vector<16x128xf32> to vector<16x128xbf16>
    %c0_5 = arith.constant 0 : index
    %c0_6 = arith.constant 0 : index
    %9 = vector.load %arg4[%c0_5, %c0_6] : memref<128x128xbf16, #tpu.memory_space<vmem>>, vector<128x128xbf16>
    %cst_7 = arith.constant dense<0.000000e+00> : vector<16x128xf32>
    %10 = tpu.matmul %8, %9, %cst_7 {dimension_numbers = #tpu.dot_dimension_numbers<[1], [0], [0], [1], [0, 0, 1, 1], [], []>} : vector<16x128xbf16>, vector<128x128xbf16>, vector<16x128xf32> -> vector<16x128xf32>
    %c0_8 = arith.constant 0 : index
    %c0_9 = arith.constant 0 : index
    %11 = vector.load %arg5[%c0_8, %c0_9] : memref<1x128xf32, #tpu.memory_space<vmem>>, vector<1x128xf32>
    %12 = vector.broadcast %11 : vector<1x128xf32> to vector<16x128xf32>
    %13 = arith.addf %10, %12 : vector<16x128xf32>
    %c0_10 = arith.constant 0 : index
    %c0_11 = arith.constant 0 : index
    %14 = vector.load %arg6[%c0_10, %c0_11] : memref<16x128xf32, #tpu.memory_space<vmem>>, vector<16x128xf32>
    tpu.vector_store %arg6[%c0_10, %c0_11], %13 {strides = array<i32>} : memref<16x128xf32, #tpu.memory_space<vmem>>, vector<16x128xf32>,
    return
  }
  func.func @transform_0(%arg0: i32) -> (i32, i32) {
    %c0_i32 = arith.constant 0 : i32
    %c0_i32_0 = arith.constant 0 : i32
    return %arg0, %c0_i32 : i32, i32
  }
  func.func @transform_1(%arg0: i32) -> (i32, i32) {
    %c0_i32 = arith.constant 0 : i32
    %c0_i32_0 = arith.constant 0 : i32
    %c0_i32_1 = arith.constant 0 : i32
    return %c0_i32, %c0_i32_0 : i32, i32
  }
  func.func @transform_2(%arg0: i32) -> (i32, i32) {
    %c0_i32 = arith.constant 0 : i32
    %c0_i32_0 = arith.constant 0 : i32
    %c0_i32_1 = arith.constant 0 : i32
    return %c0_i32, %c0_i32_0 : i32, i32
  }
  func.func @transform_3(%arg0: i32) -> (i32, i32) {
    %c0_i32 = arith.constant 0 : i32
    %c0_i32_0 = arith.constant 0 : i32
    %c0_i32_1 = arith.constant 0 : i32
    return %c0_i32, %c0_i32_0 : i32, i32
  }
  func.func @transform_4(%arg0: i32) -> (i32, i32) {
    %c0_i32 = arith.constant 0 : i32
    %c0_i32_0 = arith.constant 0 : i32
    %c0_i32_1 = arith.constant 0 : i32
    return %c0_i32, %c0_i32_0 : i32, i32
  }
  func.func @transform_5(%arg0: i32) -> (i32, i32) {
    %c0_i32 = arith.constant 0 : i32
    %c0_i32_0 = arith.constant 0 : i32
    return %arg0, %c0_i32 : i32, i32
  }
}

</mosaic_0001>

<llo_original>
// kernel: classification_head.1
$region0: #{classification_head.1}
  #allocation0 [shape = 'u32[]', space=smem, size = 0x4, offset = 0x4, fixed_abs, tag = 'smem constant byte address 0x4 - core index']
  #allocation1 [shape = 'u32[72,128]{1,0:T(1,128)}', space=vmem, size = 0x9000, scoped, tag = 'internal scratch']
  %s0 = inlined_call_operand.vmem [shape: f32[16,128], index: 0, kind: input, shape index: {}]
  %s1 = inlined_call_operand.vmem [shape: bf16[128,128], index: 1, kind: input, shape index: {}]
  %s2 = inlined_call_operand.vmem [shape: f32[1,128], index: 2, kind: input, shape index: {}]
  %s3 = inlined_call_operand.vmem [shape: bf16[128,128], index: 3, kind: input, shape index: {}]
  %s4 = inlined_call_operand.vmem [shape: f32[1,128], index: 4, kind: input, shape index: {}]
  %s5 = inlined_call_operand.vmem [shape: f32[16,128], index: 5, kind: output, shape index: {}]
  %s6 = sld [smem:[#allocation0]]
  $region30: #{classification_head.1} parent=0
    _
  %s8 = ssub.s32 1, %s6
  %s9 = scalar_select 0, %s8, %s6
  // Predicated region
  $region2: #{classification_head.1} parent=0 // pred_check
    _
  $region3: #{classification_head.1} parent=0 // pred_check_branch
    %11 = sbr.rel (0) target = $region5
  $region4: #{classification_head.1} parent=0 // pred_region
    _
  $region5: #{classification_head.1} parent=0 // pred_fallthru
    _
  // Predicated region
  $region6: #{classification_head.1} parent=0 // pred_check
    _
  $region7: #{classification_head.1} parent=0 // pred_check_branch
    %13 = sbr.rel (0) target = $region9
  $region8: #{classification_head.1} parent=0 // pred_region
    _
  $region9: #{classification_head.1} parent=0 // pred_fallthru
    _
  // Predicated region
  $region10: #{classification_head.1} parent=0 // pred_check
    _
  $region11: #{classification_head.1} parent=0 // pred_check_branch
    %15 = sbr.rel (0) target = $region13
  $region12: #{classification_head.1} parent=0 // pred_region
    _
  $region13: #{classification_head.1} parent=0 // pred_fallthru
    _
  // Predicated region
  $region14: #{classification_head.1} parent=0 // pred_check
    _
  $region15: #{classification_head.1} parent=0 // pred_check_branch
    %17 = sbr.rel (0) target = $region17
  $region16: #{classification_head.1} parent=0 // pred_region
    _
  $region17: #{classification_head.1} parent=0 // pred_fallthru
    _
  // Predicated region
  $region18: #{classification_head.1} parent=0 // pred_check
    _
  $region19: #{classification_head.1} parent=0 // pred_check_branch
    %19 = sbr.rel (0) target = $region21
  $region20: #{classification_head.1} parent=0 // pred_region
    _
  $region21: #{classification_head.1} parent=0 // pred_fallthru
    _
  %v20 = vld [vmem:[%s0] sm:$0xff]
  %v21 = vld [vmem:[%s0 + $0x8] sm:$0xff]
  %v22 = vpack.c.bf16 %v21, %v20
  %v23 = vld [vmem:[%s1] sm:$0xf]
  %v24 = vld [vmem:[%s1 + $0x4] sm:$0xf]
  %v25 = vld [vmem:[%s1 + $0x8] sm:$0xf]
  %v26 = vld [vmem:[%s1 + $0xc] sm:$0xf]
  %v27 = vld [vmem:[%s1 + $0x10] sm:$0xf]
  %v28 = vld [vmem:[%s1 + $0x14] sm:$0xf]
  %v29 = vld [vmem:[%s1 + $0x18] sm:$0xf]
  %v30 = vld [vmem:[%s1 + $0x1c] sm:$0xf]
  %v31 = vld [vmem:[%s1 + $0x20] sm:$0xf]
  %v32 = vld [vmem:[%s1 + $0x24] sm:$0xf]
  %v33 = vld [vmem:[%s1 + $0x28] sm:$0xf]
  %v34 = vld [vmem:[%s1 + $0x2c] sm:$0xf]
  %v35 = vld [vmem:[%s1 + $0x30] sm:$0xf]
  %v36 = vld [vmem:[%s1 + $0x34] sm:$0xf]
  %v37 = vld [vmem:[%s1 + $0x38] sm:$0xf]
  %v38 = vld [vmem:[%s1 + $0x3c] sm:$0xf]
  %v39 = vld [vmem:[%s2] sm:$0x1]
  %v41 = vperm.slane %v39, 0
  %v59 = vunpack.c.l.b16 %v23
  %v60 = vunpack.c.l.b16 %v24
  %v61 = vunpack.c.l.b16 %v25
  %v62 = vunpack.c.l.b16 %v26
  %v63 = vunpack.c.l.b16 %v27
  %v64 = vunpack.c.l.b16 %v28
  %v65 = vunpack.c.l.b16 %v29
  %v66 = vunpack.c.l.b16 %v30
  %v67 = vunpack.c.l.b16 %v31
  %v68 = vunpack.c.l.b16 %v32
  %v69 = vunpack.c.l.b16 %v33
  %v70 = vunpack.c.l.b16 %v34
  %v71 = vunpack.c.l.b16 %v35
  %v72 = vunpack.c.l.b16 %v36
  %v73 = vunpack.c.l.b16 %v37
  %v74 = vunpack.c.l.b16 %v38
  %v75 = vpack.c.b16 %v60, %v59
  %v76 = vpack.c.b16 %v62, %v61
  %v77 = vpack.c.b16 %v64, %v63
  %v78 = vpack.c.b16 %v66, %v65
  %v79 = vpack.c.b16 %v68, %v67
  %v80 = vpack.c.b16 %v70, %v69
  %v81 = vpack.c.b16 %v72, %v71
  %v82 = vpack.c.b16 %v74, %v73
  %91 = vmatpush.bf16.msra.mxu0 %v82
  %92 = vmatpush.bf16.msra.mxu0 %v81
  %93 = vmatpush.bf16.msra.mxu0 %v80
  %94 = vmatpush.bf16.msra.mxu0 %v79
  %95 = vmatpush.bf16.msra.mxu0 %v78
  %96 = vmatpush.bf16.msra.mxu0 %v77
  %97 = vmatpush.bf16.msra.mxu0 %v76
  %98 = vmatpush.bf16.msra.mxu0 %v75
  %99 = vmatmul.bf16.gmra.mxu0 %v22
  %v100 = vpop.f32.mrf.mxu0
  %v101 = vadd.f32 %v41, %v100
  %v102 = vpop.f32.mrf.mxu0
  %v103 = vadd.f32 %v41, %v102
  %104 = vdwg.mxu0
  %v105 = vtanh.pop %v101
  %v106 = vtanh.pop %v103
  %v107 = vpack.c.bf16 %v106, %v105
  %v108 = vld [vmem:[%s3] sm:$0xf]
  %v109 = vld [vmem:[%s3 + $0x4] sm:$0xf]
  %v110 = vld [vmem:[%s3 + $0x8] sm:$0xf]
  %v111 = vld [vmem:[%s3 + $0xc] sm:$0xf]
  %v112 = vld [vmem:[%s3 + $0x10] sm:$0xf]
  %v113 = vld [vmem:[%s3 + $0x14] sm:$0xf]
  %v114 = vld [vmem:[%s3 + $0x18] sm:$0xf]
  %v115 = vld [vmem:[%s3 + $0x1c] sm:$0xf]
  %v116 = vld [vmem:[%s3 + $0x20] sm:$0xf]
  %v117 = vld [vmem:[%s3 + $0x24] sm:$0xf]
  %v118 = vld [vmem:[%s3 + $0x28] sm:$0xf]
  %v119 = vld [vmem:[%s3 + $0x2c] sm:$0xf]
  %v120 = vld [vmem:[%s3 + $0x30] sm:$0xf]
  %v121 = vld [vmem:[%s3 + $0x34] sm:$0xf]
  %v122 = vld [vmem:[%s3 + $0x38] sm:$0xf]
  %v123 = vld [vmem:[%s3 + $0x3c] sm:$0xf]
  %v124 = vld [vmem:[%s4] sm:$0x1]
  %v126 = vperm.slane %v124, 0
  %v144 = vunpack.c.l.b16 %v108
  %v145 = vunpack.c.l.b16 %v109
  %v146 = vunpack.c.l.b16 %v110
  %v147 = vunpack.c.l.b16 %v111
  %v148 = vunpack.c.l.b16 %v112
  %v149 = vunpack.c.l.b16 %v113
  %v150 = vunpack.c.l.b16 %v114
  %v151 = vunpack.c.l.b16 %v115
  %v152 = vunpack.c.l.b16 %v116
  %v153 = vunpack.c.l.b16 %v117
  %v154 = vunpack.c.l.b16 %v118
  %v155 = vunpack.c.l.b16 %v119
  %v156 = vunpack.c.l.b16 %v120
  %v157 = vunpack.c.l.b16 %v121
  %v158 = vunpack.c.l.b16 %v122
  %v159 = vunpack.c.l.b16 %v123
  %v160 = vpack.c.b16 %v145, %v144
  %v161 = vpack.c.b16 %v147, %v146
  %v162 = vpack.c.b16 %v149, %v148
  %v163 = vpack.c.b16 %v151, %v150
  %v164 = vpack.c.b16 %v153, %v152
  %v165 = vpack.c.b16 %v155, %v154
  %v166 = vpack.c.b16 %v157, %v156
  %v167 = vpack.c.b16 %v159, %v158
  %176 = vmatpush.bf16.msra.mxu0 %v167
  %177 = vmatpush.bf16.msra.mxu0 %v166
  %178 = vmatpush.bf16.msra.mxu0 %v165
  %179 = vmatpush.bf16.msra.mxu0 %v164
  %180 = vmatpush.bf16.msra.mxu0 %v163
  %181 = vmatpush.bf16.msra.mxu0 %v162
  %182 = vmatpush.bf16.msra.mxu0 %v161
  %183 = vmatpush.bf16.msra.mxu0 %v160
  %184 = vmatmul.bf16.gmra.mxu0 %v107
  %v185 = vpop.f32.mrf.mxu0
  %v186 = vadd.f32 %v126, %v185
  %v187 = vpop.f32.mrf.mxu0
  %v188 = vadd.f32 %v126, %v187
  %189 = vdwg.mxu0
  %190 = vst [vmem:[%s5] sm:$0xff] %v186
  %191 = vst [vmem:[%s5 + $0x8] sm:$0xff] %v188
  // Predicated region
  $region22: #{classification_head.1} parent=0 // pred_check
    _
  $region23: #{classification_head.1} parent=0 // pred_check_branch
    %193 = sbr.rel (0) target = $region25
  $region24: #{classification_head.1} parent=0 // pred_region
    _
  $region25: #{classification_head.1} parent=0 // pred_fallthru
    _
  // Predicated region
  $region26: #{classification_head.1} parent=0 // pred_check
    _
  $region27: #{classification_head.1} parent=0 // pred_check_branch
    %195 = sbr.rel (0) target = $region29
  $region28: #{classification_head.1} parent=0 // pred_region
    _
  $region29: #{classification_head.1} parent=0 // pred_fallthru
    _

</llo_original>
